<compile_context>
chip_gen: v5e
topology: v5e:2x2
jax: 0.10.0
libtpu: 0.0.40
codegen_flags: <defaults>
</compile_context>

<pallas_src>
import jax
import jax.numpy as jnp
from jax.experimental import pallas as pl
from jax.experimental.pallas import tpu as pltpu

EPS = 1e-5  # PyTorch BatchNorm1d default


def residual_block_kernel(x_ref, w_m1_ref, w_0_ref, w_p1_ref, b_ref, o_ref):
    x = x_ref[...]                                   # (nb, C, L) f32
    nb, c, l = x.shape

    # Shifted copies for the kernel_size=3, dilation=1, padding=1 conv.
    # Positive-shift rolls run on the XLU; the wrapped-around boundary lane is
    # zeroed so it matches the conv's zero padding.  The roll is along L only,
    # so stacking nb batches in the leading dim cannot leak across sequences.
    lane = jax.lax.broadcasted_iota(jnp.int32, x.shape, 2)
    x_m1 = jnp.where(lane == 0, 0.0, pltpu.roll(x, shift=1, axis=2))      # x[:, :, l-1]
    x_p1 = jnp.where(lane == l - 1, 0.0, pltpu.roll(x, shift=l - 1, axis=2))  # x[:, :, l+1]

    def tap_dot(w2d, xs):
        # (C_out, C_in) weight applied per batch: (nb,C_out,C_in) x (nb,C_in,L).
        wb = jnp.broadcast_to(w2d, (nb,) + w2d.shape)
        return jax.lax.dot_general(
            wb, xs,
            dimension_numbers=(((2,), (1,)), ((0,), (0,))),
            preferred_element_type=jnp.float32)

    # Three accumulating MXU dots (no stacked-tap concat / activation copies).
    y = (tap_dot(w_m1_ref[...], x_m1)
         + tap_dot(w_0_ref[...], x)
         + tap_dot(w_p1_ref[...], x_p1))
    y = y + b_ref[...]                               # folded BN + conv bias, (C, 1)
    y = jnp.maximum(y, 0.0)                          # ReLU
    # Dropout is identity in eval mode.
    # TODO(synk): training-mode dropout would need pltpu.prng_* and cannot
    # match PyTorch's RNG stream bit-for-bit.
    o_ref[...] = (x + y).astype(o_ref.dtype)


def _pick_batches_per_block(n, c, l, *, target_bytes=4 << 20, min_bytes=512 << 10):
    """Batches per grid step: biggest divisor of n whose (nb, C, L) f32 tile
    stays under `target_bytes`, preferring >=2 grid steps (megacore) as long
    as that does not give up a tile that meets the byte budget for one that
    does not (per-step overhead ~0.35 us dominates for tiny tiles)."""
    per_batch = c * l * 4
    divisors = [d for d in range(1, n + 1) if n % d == 0]
    fits = [d for d in divisors if d * per_batch <= target_bytes] or [1]
    best = max(fits)
    two_step = [d for d in fits if n // d >= 2]
    if two_step:
        alt = max(two_step)
        if alt * per_batch >= min_bytes or best * per_batch < min_bytes:
            best = alt
    return best


def residual_block(x, w, b, gamma, beta, running_mean, running_var):
    """x: (N, C, L); w: PyTorch Conv1d weight (C_out, C_in, K=3); rest: (C,)."""
    N, C, L = x.shape
    K = w.shape[-1]
    assert K == 3, "ResidualBlock uses kernel_size=3"

    # Fold BatchNorm (eval mode, running stats) and the conv bias into the
    # conv weights: scale = gamma / sqrt(var + eps).  One (C_out, C_in) weight
    # per tap so the kernel does three accumulating dots with no slicing.
    scale = (gamma * jax.lax.rsqrt(running_var + EPS)).astype(jnp.float32)
    w_f = w.astype(jnp.float32) * scale[:, None, None]            # (C_out, C_in, K)
    b_f = ((b - running_mean) * scale + beta).reshape(C, 1).astype(jnp.float32)
    w_m1, w_0, w_p1 = w_f[:, :, 0], w_f[:, :, 1], w_f[:, :, 2]

    x = x.astype(jnp.float32)

    nb = _pick_batches_per_block(N, C, L)
    grid = (N // nb,)

    tile_bytes = nb * C * L * 4
    fixed_bytes = (3 * C * C + C) * 4
    # Double-buffered input + output tiles, plus weights/bias and slack.
    vmem_needed = 4 * tile_bytes + 2 * fixed_bytes + (2 << 20)
    vmem_limit = int(min(max(vmem_needed, 16 << 20), 32 << 20))

    cost = pl.CostEstimate(
        flops=2 * 3 * C * C * N * L,
        transcendentals=0,
        bytes_accessed=(2 * N * C * L + 3 * C * C + C) * 4)

    out = pl.pallas_call(
        residual_block_kernel,
        out_shape=jax.ShapeDtypeStruct((N, C, L), jnp.float32),
        grid_spec=pltpu.PrefetchScalarGridSpec(
            num_scalar_prefetch=0,
            grid=grid,
            in_specs=[
                pl.BlockSpec((nb, C, L), lambda t: (t, 0, 0)),    # activations
                pl.BlockSpec((C, C), lambda t: (0, 0)),           # tap k=-1 weight
                pl.BlockSpec((C, C), lambda t: (0, 0)),           # tap k= 0 weight
                pl.BlockSpec((C, C), lambda t: (0, 0)),           # tap k=+1 weight
                pl.BlockSpec((C, 1), lambda t: (0, 0)),           # folded BN+bias
            ],
            out_specs=pl.BlockSpec((nb, C, L), lambda t: (t, 0, 0)),
        ),
        compiler_params=pltpu.CompilerParams(
            dimension_semantics=("parallel",),
            vmem_limit_bytes=vmem_limit),
        cost_estimate=cost,
    )(x, w_m1, w_0, w_p1, b_f)

    return out


if __name__ == "__main__":
    N, C, L, K = 2, 8, 128, 3
    keys = jax.random.split(jax.random.PRNGKey(0), 7)
    x = jax.random.normal(keys[0], (N, C, L), jnp.float32)
    # Deterministic synthetic parameters (shapes from nn.Conv1d / nn.BatchNorm1d).
    w = 0.1 * jax.random.normal(keys[1], (C, C, K), jnp.float32)   # (C_out, C_in, K)
    b = 0.1 * jax.random.normal(keys[2], (C,), jnp.float32)
    gamma = 1.0 + 0.1 * jax.random.normal(keys[3], (C,), jnp.float32)
    beta = 0.1 * jax.random.normal(keys[4], (C,), jnp.float32)
    running_mean = 0.1 * jax.random.normal(keys[5], (C,), jnp.float32)
    running_var = jnp.abs(1.0 + 0.1 * jax.random.normal(keys[6], (C,), jnp.float32))

    out = jax.block_until_ready(
        residual_block(x, w, b, gamma, beta, running_mean, running_var))

    # Pure-JAX reference (same eval-mode semantics) for a sanity check.
    y_ref = jax.lax.conv_general_dilated(
        x, w, window_strides=(1,), padding=[(1, 1)],
        dimension_numbers=("NCH", "OIH", "NCH")) + b[None, :, None]
    y_ref = (y_ref - running_mean[None, :, None]) * jax.lax.rsqrt(
        running_var[None, :, None] + EPS)
    y_ref = y_ref * gamma[None, :, None] + beta[None, :, None]
    ref = x + jnp.maximum(y_ref, 0.0)
    assert jnp.allclose(out, ref, atol=1e-2, rtol=1e-2), float(
        jnp.max(jnp.abs(out - ref)))

    print("KERNEL_OK")
</pallas_src>

<mosaic_0001>
module attributes {stable_mosaic.version = 11 : i64} {
  func.func @residual_block_kernel(%arg0: i32, %arg1: memref<1x8x128xf32, #tpu.memory_space<vmem>>, %arg2: memref<8x8xf32, #tpu.memory_space<vmem>>, %arg3: memref<8x8xf32, #tpu.memory_space<vmem>>, %arg4: memref<8x8xf32, #tpu.memory_space<vmem>>, %arg5: memref<8x1xf32, #tpu.memory_space<vmem>>, %arg6: memref<1x8x128xf32, #tpu.memory_space<vmem>>) attributes {dimension_semantics = [#tpu.dimension_semantics<parallel>], iteration_bounds = array<i64: 2>, scalar_prefetch = 0 : i64, scratch_operands = 0 : i64, tpu.core_type = #tpu.core_type<tc>, window_params = [{transform_indices = @transform_0, window_bounds = array<i64: 1, 8, 128>}, {pipeline_mode = #tpu.pipeline_mode<synchronous>, transform_indices = @transform_1, window_bounds = array<i64: 8, 8>}, {pipeline_mode = #tpu.pipeline_mode<synchronous>, transform_indices = @transform_2, window_bounds = array<i64: 8, 8>}, {pipeline_mode = #tpu.pipeline_mode<synchronous>, transform_indices = @transform_3, window_bounds = array<i64: 8, 8>}, {pipeline_mode = #tpu.pipeline_mode<synchronous>, transform_indices = @transform_4, window_bounds = array<i64: 8, 1>}, {transform_indices = @transform_5, window_bounds = array<i64: 1, 8, 128>}]} {
    %c0 = arith.constant 0 : index
    %c0_0 = arith.constant 0 : index
    %c0_1 = arith.constant 0 : index
    %0 = vector.load %arg1[%c0, %c0_0, %c0_1] : memref<1x8x128xf32, #tpu.memory_space<vmem>>, vector<1x8x128xf32>
    %1 = tpu.iota {dimensions = array<i32: 2>} : vector<1x8x128xi32>
    %c0_i32 = arith.constant 0 : i32
    %2 = vector.broadcast %c0_i32 : i32 to vector<1x8x128xi32>
    %3 = arith.cmpi eq, %1, %2 : vector<1x8x128xi32>
    %c1_i32 = arith.constant 1 : i32
    %4 = tpu.dynamic_rotate %0 by %c1_i32 dim 2 : vector<1x8x128xf32>, i32 -> vector<1x8x128xf32>
    %cst = arith.constant 0.000000e+00 : f32
    %5 = vector.broadcast %cst : f32 to vector<1x8x128xf32>
    %6 = arith.select %3, %5, %4 : vector<1x8x128xi1>, vector<1x8x128xf32>
    %c127_i32 = arith.constant 127 : i32
    %7 = vector.broadcast %c127_i32 : i32 to vector<1x8x128xi32>
    %8 = arith.cmpi eq, %1, %7 : vector<1x8x128xi32>
    %c127_i32_2 = arith.constant 127 : i32
    %9 = tpu.dynamic_rotate %0 by %c127_i32_2 dim 2 : vector<1x8x128xf32>, i32 -> vector<1x8x128xf32>
    %cst_3 = arith.constant 0.000000e+00 : f32
    %10 = vector.broadcast %cst_3 : f32 to vector<1x8x128xf32>
    %11 = arith.select %8, %10, %9 : vector<1x8x128xi1>, vector<1x8x128xf32>
    %c0_4 = arith.constant 0 : index
    %c0_5 = arith.constant 0 : index
    %12 = vector.load %arg2[%c0_4, %c0_5] : memref<8x8xf32, #tpu.memory_space<vmem>>, vector<8x8xf32>
    %13 = vector.shape_cast %12 : vector<8x8xf32> to vector<1x8x8xf32>
    %cst_6 = arith.constant dense<0.000000e+00> : vector<1x8x128xf32>
    %14 = tpu.matmul %13, %6, %cst_6 {dimension_numbers = #tpu.dot_dimension_numbers<[2], [1], [1], [2], [0, 0, 0, 1, 1, 2], [0], [0]>} : vector<1x8x8xf32>, vector<1x8x128xf32>, vector<1x8x128xf32> -> vector<1x8x128xf32>
    %c0_7 = arith.constant 0 : index
    %c0_8 = arith.constant 0 : index
    %15 = vector.load %arg3[%c0_7, %c0_8] : memref<8x8xf32, #tpu.memory_space<vmem>>, vector<8x8xf32>
    %16 = vector.shape_cast %15 : vector<8x8xf32> to vector<1x8x8xf32>
    %cst_9 = arith.constant dense<0.000000e+00> : vector<1x8x128xf32>
    %17 = tpu.matmul %16, %0, %cst_9 {dimension_numbers = #tpu.dot_dimension_numbers<[2], [1], [1], [2], [0, 0, 0, 1, 1, 2], [0], [0]>} : vector<1x8x8xf32>, vector<1x8x128xf32>, vector<1x8x128xf32> -> vector<1x8x128xf32>
    %18 = arith.addf %14, %17 : vector<1x8x128xf32>
    %c0_10 = arith.constant 0 : index
    %c0_11 = arith.constant 0 : index
    %19 = vector.load %arg4[%c0_10, %c0_11] : memref<8x8xf32, #tpu.memory_space<vmem>>, vector<8x8xf32>
    %20 = vector.shape_cast %19 : vector<8x8xf32> to vector<1x8x8xf32>
    %cst_12 = arith.constant dense<0.000000e+00> : vector<1x8x128xf32>
    %21 = tpu.matmul %20, %11, %cst_12 {dimension_numbers = #tpu.dot_dimension_numbers<[2], [1], [1], [2], [0, 0, 0, 1, 1, 2], [0], [0]>} : vector<1x8x8xf32>, vector<1x8x128xf32>, vector<1x8x128xf32> -> vector<1x8x128xf32>
    %22 = arith.addf %18, %21 : vector<1x8x128xf32>
    %c0_13 = arith.constant 0 : index
    %c0_14 = arith.constant 0 : index
    %23 = vector.load %arg5[%c0_13, %c0_14] : memref<8x1xf32, #tpu.memory_space<vmem>>, vector<8x1xf32>
    %24 = vector.shape_cast %23 : vector<8x1xf32> to vector<1x8x1xf32>
    %25 = vector.broadcast %24 : vector<1x8x1xf32> to vector<1x8x128xf32>
    %26 = arith.addf %22, %25 : vector<1x8x128xf32>
    %cst_15 = arith.constant 0.000000e+00 : f32
    %27 = vector.broadcast %cst_15 : f32 to vector<1x8x128xf32>
    %28 = arith.maximumf %26, %27 : vector<1x8x128xf32>
    %29 = arith.addf %0, %28 : vector<1x8x128xf32>
    %c0_16 = arith.constant 0 : index
    %c0_17 = arith.constant 0 : index
    %c0_18 = arith.constant 0 : index
    %30 = vector.load %arg6[%c0_16, %c0_17, %c0_18] : memref<1x8x128xf32, #tpu.memory_space<vmem>>, vector<1x8x128xf32>
    tpu.vector_store %arg6[%c0_16, %c0_17, %c0_18], %29 {strides = array<i32>} : memref<1x8x128xf32, #tpu.memory_space<vmem>>, vector<1x8x128xf32>,
    return
  }
  func.func @transform_0(%arg0: i32) -> (i32, i32, i32) {
    %c0_i32 = arith.constant 0 : i32
    %c0_i32_0 = arith.constant 0 : i32
    %c0_i32_1 = arith.constant 0 : i32
    return %arg0, %c0_i32, %c0_i32_0 : i32, i32, i32
  }
  func.func @transform_1(%arg0: i32) -> (i32, i32) {
    %c0_i32 = arith.constant 0 : i32
    %c0_i32_0 = arith.constant 0 : i32
    %c0_i32_1 = arith.constant 0 : i32
    return %c0_i32, %c0_i32_0 : i32, i32
  }
  func.func @transform_2(%arg0: i32) -> (i32, i32) {
    %c0_i32 = arith.constant 0 : i32
    %c0_i32_0 = arith.constant 0 : i32
    %c0_i32_1 = arith.constant 0 : i32
    return %c0_i32, %c0_i32_0 : i32, i32
  }
  func.func @transform_3(%arg0: i32) -> (i32, i32) {
    %c0_i32 = arith.constant 0 : i32
    %c0_i32_0 = arith.constant 0 : i32
    %c0_i32_1 = arith.constant 0 : i32
    return %c0_i32, %c0_i32_0 : i32, i32
  }
  func.func @transform_4(%arg0: i32) -> (i32, i32) {
    %c0_i32 = arith.constant 0 : i32
    %c0_i32_0 = arith.constant 0 : i32
    %c0_i32_1 = arith.constant 0 : i32
    return %c0_i32, %c0_i32_0 : i32, i32
  }
  func.func @transform_5(%arg0: i32) -> (i32, i32, i32) {
    %c0_i32 = arith.constant 0 : i32
    %c0_i32_0 = arith.constant 0 : i32
    %c0_i32_1 = arith.constant 0 : i32
    return %arg0, %c0_i32, %c0_i32_0 : i32, i32, i32
  }
}

</mosaic_0001>

<llo_original>
// kernel: tpu_custom_call.1
$region0: #{tpu_custom_call.1}
  #allocation0 [shape = 'u32[]', space=smem, size = 0x4, offset = 0x4, fixed_abs, tag = 'smem constant byte address 0x4 - core index']
  #allocation1 [shape = 'u32[72,128]{1,0:T(1,128)}', space=vmem, size = 0x9000, scoped, tag = 'internal scratch']
  %s0 = inlined_call_operand.hbm [shape: f32[2,8,128], index: 0, kind: input, shape index: {}]
  %s1 = inlined_call_operand.vmem [shape: f32[8,8], index: 1, kind: input, shape index: {}]
  %s2 = inlined_call_operand.hbm [shape: f32[8,8], index: 2, kind: input, shape index: {}]
  %s3 = inlined_call_operand.hbm [shape: f32[8,8], index: 3, kind: input, shape index: {}]
  %s4 = inlined_call_operand.vmem [shape: f32[8,1], index: 4, kind: input, shape index: {}]
  %s5 = inlined_call_operand.hbm [shape: f32[2,8,128], index: 5, kind: output, shape index: {}]
  %s6 = sld [smem:[#allocation0]]
  $region65: #{tpu_custom_call.1} parent=0
    _
  %s8 = ssub.s32 1, %s6
  %s9 = scalar_select 0, %s8, %s6
  $region1: #{tpu_custom_call.1} parent=0
    #allocation2 [shape = 'u8[8192]{0}', space=vmem, size = 0x2000, scoped, tag = 'input window, operand 0']
    #allocation3 [shape = 's32[2]{0}', space=sflag, size = 0x8, scoped, tag = 'scoped memory for tpu_custom_call.1']
    #allocation4 [shape = 's32[2]{0}', space=sflag, size = 0x8, scoped, tag = 'scoped memory for tpu_custom_call.1']
    #allocation5 [shape = 'u8[4096]{0}', space=vmem, size = 0x1000, scoped, tag = 'input window, operand 2, single buffered']
    #allocation6 [shape = 's32[1]{0}', space=sflag, size = 0x4, scoped, tag = 'scoped memory for tpu_custom_call.1']
    #allocation7 [shape = 'u8[4096]{0}', space=vmem, size = 0x1000, scoped, tag = 'input window, operand 3, single buffered']
    #allocation8 [shape = 'u8[8192]{0}', space=vmem, size = 0x2000, scoped, tag = 'output window, operand 0']
    %10 = vsyncpa [#allocation3], 0
    %s11 = scalar_lea.sflag [#allocation3], 1
    %12 = vsyncpa %s11, 0
    %13 = vsyncpa [#allocation6], 0
    %14 = vsyncpa [#allocation4], 0
    %s15 = scalar_lea.sflag [#allocation4], 1
    %16 = vsyncpa %s15, 0
    loop: start=0, step=1, limit=4
    $region2: #{tpu_custom_call.1} parent=1 // loop_pre_header
      _
    $region3: #{tpu_custom_call.1} parent=1 // loop_header
      %s18 = sphi 0, %s22
      %p19 = scmp.ge.s32.totalorder %s18, 4
      %s28 = sphi 0, %s30
      %s31 = sphi 0, %s28
      %s32 = sphi 0, %s31
      %s48 = sphi 0, %s32
      %s52 = sphi 0, %s52
      %s54 = sphi 0, %s52
      %s55 = sphi 0, %s54
      %s69 = sphi 0, %s55
      %s73 = sphi 0, %s73
      %s75 = sphi 0, %s73
      %s76 = sphi 0, %s75
      %s90 = sphi 0, %s76
      %s94 = sphi 0, %s94
      %s96 = sphi 0, %s94
      %s97 = sphi 0, %s96
      %s111 = sphi 0, %s97
      %s115 = sphi 0, %s115
      %s117 = sphi 0, %s115
      %s118 = sphi 0, %s117
      %s132 = sphi 0, %s118
      %s138 = sphi 0, %s140
      %s141 = sphi 0, %s138
      %s142 = sphi 0, %s141
      %s158 = sphi 0, %s142
    $region4: #{tpu_custom_call.1} parent=1 // loop_header_branch
      %21 = sbr.rel (%p19) target = $region8
    $region5: #{tpu_custom_call.1} parent=1 // loop_body
      %s23 = ssub.s32 %s18, 1
      %s24 = ssub.s32 %s18, 2
      %s25 = sadd.s32 %s18, 1
      %s26 = ssub.s32 %s18, %s25
      %p27 = scmp.eq.s32.totalorder %s26, 0
      %s29 = sadd.s32 %s28, 1
      %s30 = scalar_select %p27, %s28, %s29
      %p33 = pneg %p27
      %p34 = scmp.eq.s32.totalorder %s18, 1
      %p35 = por %p33, %p34
      %p36 = scmp.ne.s32.totalorder %s28, %s31
      %p37 = scmp.eq.s32.totalorder %s18, 0
      %p38 = por %p36, %p37
      %p39 = scmp.ne.s32.totalorder %s28, %s31
      %p40 = scmp.eq.s32.totalorder %s23, 1
      %p41 = por %p39, %p40
      %p42 = scmp.ne.s32.totalorder %s31, %s32
      %p43 = scmp.eq.s32.totalorder %s23, 0
      %p44 = por %p42, %p43
      %p45 = scmp.ne.s32.totalorder %s31, %s32
      %p46 = scmp.eq.s32.totalorder %s24, 1
      %p47 = por %p45, %p46
      %p49 = scmp.ne.s32.totalorder %s32, %s48
      %p50 = scmp.eq.s32.totalorder %s24, 0
      %p51 = por %p49, %p50
      %s53 = sadd.s32 %s52, 1
      %p56 = scmp.eq.s32.totalorder %s18, 1
      %p57 = scmp.ne.s32.totalorder %s52, %s54
      %p58 = scmp.eq.s32.totalorder %s18, 0
      %p59 = por %p57, %p58
      %p60 = scmp.ne.s32.totalorder %s52, %s54
      %p61 = scmp.eq.s32.totalorder %s23, 1
      %p62 = por %p60, %p61
      %p63 = scmp.ne.s32.totalorder %s54, %s55
      %p64 = scmp.eq.s32.totalorder %s23, 0
      %p65 = por %p63, %p64
      %p66 = scmp.ne.s32.totalorder %s54, %s55
      %p67 = scmp.eq.s32.totalorder %s24, 1
      %p68 = por %p66, %p67
      %p70 = scmp.ne.s32.totalorder %s55, %s69
      %p71 = scmp.eq.s32.totalorder %s24, 0
      %p72 = por %p70, %p71
      %s74 = sadd.s32 %s73, 1
      %p77 = scmp.eq.s32.totalorder %s18, 1
      %p78 = scmp.ne.s32.totalorder %s73, %s75
      %p79 = scmp.eq.s32.totalorder %s18, 0
      %p80 = por %p78, %p79
      %p81 = scmp.ne.s32.totalorder %s73, %s75
      %p82 = scmp.eq.s32.totalorder %s23, 1
      %p83 = por %p81, %p82
      %p84 = scmp.ne.s32.totalorder %s75, %s76
      %p85 = scmp.eq.s32.totalorder %s23, 0
      %p86 = por %p84, %p85
      %p87 = scmp.ne.s32.totalorder %s75, %s76
      %p88 = scmp.eq.s32.totalorder %s24, 1
      %p89 = por %p87, %p88
      %p91 = scmp.ne.s32.totalorder %s76, %s90
      %p92 = scmp.eq.s32.totalorder %s24, 0
      %p93 = por %p91, %p92
      %s95 = sadd.s32 %s94, 1
      %p98 = scmp.eq.s32.totalorder %s18, 1
      %p99 = scmp.ne.s32.totalorder %s94, %s96
      %p100 = scmp.eq.s32.totalorder %s18, 0
      %p101 = por %p99, %p100
      %p102 = scmp.ne.s32.totalorder %s94, %s96
      %p103 = scmp.eq.s32.totalorder %s23, 1
      %p104 = por %p102, %p103
      %p105 = scmp.ne.s32.totalorder %s96, %s97
      %p106 = scmp.eq.s32.totalorder %s23, 0
      %p107 = por %p105, %p106
      %p108 = scmp.ne.s32.totalorder %s96, %s97
      %p109 = scmp.eq.s32.totalorder %s24, 1
      %p110 = por %p108, %p109
      %p112 = scmp.ne.s32.totalorder %s97, %s111
      %p113 = scmp.eq.s32.totalorder %s24, 0
      %p114 = por %p112, %p113
      %s116 = sadd.s32 %s115, 1
      %p119 = scmp.eq.s32.totalorder %s18, 1
      %p120 = scmp.ne.s32.totalorder %s115, %s117
      %p121 = scmp.eq.s32.totalorder %s18, 0
      %p122 = por %p120, %p121
      %p123 = scmp.ne.s32.totalorder %s115, %s117
      %p124 = scmp.eq.s32.totalorder %s23, 1
      %p125 = por %p123, %p124
      %p126 = scmp.ne.s32.totalorder %s117, %s118
      %p127 = scmp.eq.s32.totalorder %s23, 0
      %p128 = por %p126, %p127
      %p129 = scmp.ne.s32.totalorder %s117, %s118
      %p130 = scmp.eq.s32.totalorder %s24, 1
      %p131 = por %p129, %p130
      %p133 = scmp.ne.s32.totalorder %s118, %s132
      %p134 = scmp.eq.s32.totalorder %s24, 0
      %p135 = por %p133, %p134
      %s136 = ssub.s32 %s18, %s25
      %p137 = scmp.eq.s32.totalorder %s136, 0
      %s139 = sadd.s32 %s138, 1
      %s140 = scalar_select %p137, %s138, %s139
      %p143 = pneg %p137
      %p144 = scmp.eq.s32.totalorder %s18, 1
      %p145 = por %p143, %p144
      %p146 = scmp.ne.s32.totalorder %s138, %s141
      %p147 = scmp.eq.s32.totalorder %s18, 0
      %p148 = por %p146, %p147
      %p149 = scmp.ne.s32.totalorder %s138, %s141
      %p150 = scmp.eq.s32.totalorder %s23, 1
      %p151 = por %p149, %p150
      %p152 = scmp.ne.s32.totalorder %s141, %s142
      %p153 = scmp.eq.s32.totalorder %s23, 0
      %p154 = por %p152, %p153
      %p155 = scmp.ne.s32.totalorder %s141, %s142
      %p156 = scmp.eq.s32.totalorder %s24, 1
      %p157 = por %p155, %p156
      %p159 = scmp.ne.s32.totalorder %s142, %s158
      %p160 = scmp.eq.s32.totalorder %s24, 0
      %p161 = por %p159, %p160
      %p162 = scmp.le.s32.totalorder 1, %s18
      %p163 = scmp.lt.s32.totalorder %s18, 3
      %p164 = pnand %p162, %p163
      %p165 = pneg %p164
      // Predicated region
      $region9: #{tpu_custom_call.1} parent=5 // pred_check
        _
      $region10: #{tpu_custom_call.1} parent=5 // pred_check_branch
        %167 = sbr.rel (%p164) target = $region12
      $region11: #{tpu_custom_call.1} parent=5 // pred_region
        %s168 = ssub.s32 %s18, 1
        // Predicated region
        $region13: #{tpu_custom_call.1} parent=11 // pred_check
          %p169 = pneg %p65
        $region14: #{tpu_custom_call.1} parent=11 // pred_check_branch
          %171 = sbr.rel (%p169) target = $region16
        $region15: #{tpu_custom_call.1} parent=11 // pred_region
          _
        $region16: #{tpu_custom_call.1} parent=11 // pred_fallthru
          _
        // Predicated region
        $region17: #{tpu_custom_call.1} parent=11 // pred_check
          %p172 = pneg %p86
        $region18: #{tpu_custom_call.1} parent=11 // pred_check_branch
          %174 = sbr.rel (%p172) target = $region20
        $region19: #{tpu_custom_call.1} parent=11 // pred_region
          %176 = vsyncadd [#allocation6], 0
          %s178 = sshll.u32 %s2, 4
          %s179 = int_to_ptr.hbm [resolvable:$true] %s178
          %s180 = sshll.u32 [#allocation5], 4
          %s181 = int_to_ptr.vmem [resolvable:$true] %s180
          %183 = dma.hbm_to_vmem [thread:$0]  %s179, 128, %s181, [#allocation6]
        $region20: #{tpu_custom_call.1} parent=11 // pred_fallthru
          _
        // Predicated region
        $region21: #{tpu_custom_call.1} parent=11 // pred_check
          %p184 = pneg %p107
        $region22: #{tpu_custom_call.1} parent=11 // pred_check_branch
          %186 = sbr.rel (%p184) target = $region24
        $region23: #{tpu_custom_call.1} parent=11 // pred_region
          %188 = vsyncadd [#allocation6], 0
          %s190 = sshll.u32 %s3, 4
          %s191 = int_to_ptr.hbm [resolvable:$true] %s190
          %s192 = sshll.u32 [#allocation7], 4
          %s193 = int_to_ptr.vmem [resolvable:$true] %s192
          %195 = dma.hbm_to_vmem [thread:$0]  %s191, 128, %s193, [#allocation6]
        $region24: #{tpu_custom_call.1} parent=11 // pred_fallthru
          _
        // Predicated region
        $region25: #{tpu_custom_call.1} parent=11 // pred_check
          %p196 = pneg %p128
        $region26: #{tpu_custom_call.1} parent=11 // pred_check_branch
          %198 = sbr.rel (%p196) target = $region28
        $region27: #{tpu_custom_call.1} parent=11 // pred_region
          _
        $region28: #{tpu_custom_call.1} parent=11 // pred_fallthru
          _
      $region12: #{tpu_custom_call.1} parent=5 // pred_fallthru
        _
      %p199 = scmp.lt.s32.totalorder %s18, 2
      // Predicated region
      $region29: #{tpu_custom_call.1} parent=5 // pred_check
        %p200 = pneg %p199
      $region30: #{tpu_custom_call.1} parent=5 // pred_check_branch
        %202 = sbr.rel (%p200) target = $region32
      $region31: #{tpu_custom_call.1} parent=5 // pred_region
        // Predicated region
        $region33: #{tpu_custom_call.1} parent=31 // pred_check
          %p203 = pneg %p38
        $region34: #{tpu_custom_call.1} parent=31 // pred_check_branch
          %205 = sbr.rel (%p203) target = $region36
        $region35: #{tpu_custom_call.1} parent=31 // pred_region
          %s206 = sand.u32 %s28, 1
          %s207 = scalar_lea.sflag [#allocation3], %s206
          %s208 = sand.u32 %s28, 1
          %s209 = smul.addr %s208, 8
          %s210 = scalar_lea.vmem [#allocation2], %s209
          %212 = vsyncadd %s207, 0
          %s213 = smul.addr %s18, 8
          %s214 = scalar_lea.hbm %s0, %s213
          %s216 = sshll.u32 %s214, 4
          %s217 = int_to_ptr.hbm [resolvable:$true] %s216
          %s218 = sshll.u32 %s210, 4
          %s219 = int_to_ptr.vmem [resolvable:$true] %s218
          %221 = dma.hbm_to_vmem [thread:$0]  %s217, 128, %s219, %s207
        $region36: #{tpu_custom_call.1} parent=31 // pred_fallthru
          _
      $region32: #{tpu_custom_call.1} parent=5 // pred_fallthru
        _
      %p222 = scmp.le.s32.totalorder 1, %s18
      %p223 = scmp.lt.s32.totalorder %s18, 3
      %p224 = pnand %p222, %p223
      %p225 = pneg %p224
      // Predicated region
      $region37: #{tpu_custom_call.1} parent=5 // pred_check
        _
      $region38: #{tpu_custom_call.1} parent=5 // pred_check_branch
        %227 = sbr.rel (%p224) target = $region40
      $region39: #{tpu_custom_call.1} parent=5 // pred_region
        %s228 = ssub.s32 %s18, 1
        %s229 = sand.u32 %s31, 1
        %s230 = scalar_lea.sflag [#allocation3], %s229
        %s231 = sand.u32 %s31, 1
        %s232 = smul.addr %s231, 8
        %s233 = scalar_lea.vmem [#allocation2], %s232
        // Predicated region
        $region41: #{tpu_custom_call.1} parent=39 // pred_check
          %p234 = pneg %p44
        $region42: #{tpu_custom_call.1} parent=39 // pred_check_branch
          %236 = sbr.rel (%p234) target = $region44
        $region43: #{tpu_custom_call.1} parent=39 // pred_region
          %238 = dma.done %s230, 128
        $region44: #{tpu_custom_call.1} parent=39 // pred_fallthru
          _
        // Predicated region
        $region45: #{tpu_custom_call.1} parent=39 // pred_check
          %p239 = pneg %p86
        $region46: #{tpu_custom_call.1} parent=39 // pred_check_branch
          %241 = sbr.rel (%p239) target = $region48
        $region47: #{tpu_custom_call.1} parent=39 // pred_region
          %243 = dma.done [#allocation6], 128
        $region48: #{tpu_custom_call.1} parent=39 // pred_fallthru
          _
        // Predicated region
        $region49: #{tpu_custom_call.1} parent=39 // pred_check
          %p244 = pneg %p107
        $region50: #{tpu_custom_call.1} parent=39 // pred_check_branch
          %246 = sbr.rel (%p244) target = $region52
        $region51: #{tpu_custom_call.1} parent=39 // pred_region
          %248 = dma.done [#allocation6], 128
        $region52: #{tpu_custom_call.1} parent=39 // pred_fallthru
          _
        %s249 = sand.u32 %s31, 1
        %s250 = scalar_lea.sflag [#allocation3], %s249
        %s251 = sand.u32 %s31, 1
        %s252 = smul.addr %s251, 8
        %s253 = scalar_lea.vmem [#allocation2], %s252
        %p254 = pneg %p44
        %p255 = pneg %p41
        %p256 = pneg %p65
        %p257 = pneg %p62
        %p258 = pneg %p86
        %p259 = pneg %p83
        %p260 = pneg %p107
        %p261 = pneg %p104
        %p262 = pneg %p128
        %p263 = pneg %p125
        %p264 = pneg %p154
        %p265 = pneg %p151
        %s266 = sand.u32 %s141, 1
        %s267 = scalar_lea.sflag [#allocation4], %s266
        %s268 = sand.u32 %s141, 1
        %s269 = smul.addr %s268, 8
        %s270 = scalar_lea.vmem [#allocation8], %s269
        %v271 = vld [vmem:[%s233] sm:$0xff]
        %v272 = vlaneseq
        %v273 = vand.u32 %v272, 127
        %vm274 = vcmp.eq.s32.totalorder %v273, 0
        %275 = vrot.lane.b32.xlu0 %v271, 1
        %v276 = vpop.permute.xlu0 %275
        %v277 = vsel %vm274, 0.0, %v276
        %vm278 = vcmp.eq.s32.totalorder %v273, 127
        %279 = vrot.lane.b32.xlu0 %v271, 127
        %v280 = vpop.permute.xlu0 %279
        %v281 = vsel %vm278, 0.0, %v280
        %v282 = vld [vmem:[%s1] sm:$0xff]
        %v283 = vld [vmem:[#allocation5] sm:$0xff]
        %vm284 = vcmask 64512
        %v286 = vsel %vm284, %v283, 0
        %288 = vmatpush.msra.mxu0 0.0
        %289 = vmatpush.msra.mxu0 0.0
        %290 = vmatpush.msra.mxu0 0.0
        %291 = vmatpush.msra.mxu0 0.0
        %292 = vmatpush.msra.mxu0 0.0
        %293 = vmatpush.msra.mxu0 0.0
        %294 = vmatpush.msra.mxu0 0.0
        %295 = vmatpush.msra.mxu0 0.0
        %296 = vmatpush.msra.mxu0 0.0
        %297 = vmatpush.msra.mxu0 0.0
        %298 = vmatpush.msra.mxu0 0.0
        %299 = vmatpush.msra.mxu0 0.0
        %300 = vmatpush.msra.mxu0 0.0
        %301 = vmatpush.msra.mxu0 0.0
        %302 = vmatpush.msra.mxu0 0.0
        %303 = vmatpush.msra.mxu0 %v271
        %304 = vmatmul.f32.gmra.mxu0 %v286
        %v305 = vpop.f32.mrf.mxu0
        %v306 = vadd.f32 0.0, %v305
        %307 = vdwg.mxu0
        %v309 = vsel %vm284, %v282, 0
        %311 = vmatpush.msra.mxu0 0.0
        %312 = vmatpush.msra.mxu0 0.0
        %313 = vmatpush.msra.mxu0 0.0
        %314 = vmatpush.msra.mxu0 0.0
        %315 = vmatpush.msra.mxu0 0.0
        %316 = vmatpush.msra.mxu0 0.0
        %317 = vmatpush.msra.mxu0 0.0
        %318 = vmatpush.msra.mxu0 0.0
        %319 = vmatpush.msra.mxu0 0.0
        %320 = vmatpush.msra.mxu0 0.0
        %321 = vmatpush.msra.mxu0 0.0
        %322 = vmatpush.msra.mxu0 0.0
        %323 = vmatpush.msra.mxu0 0.0
        %324 = vmatpush.msra.mxu0 0.0
        %325 = vmatpush.msra.mxu0 0.0
        %326 = vmatpush.msra.mxu0 %v277
        %327 = vmatmul.f32.gmra.mxu0 %v309
        %v328 = vpop.f32.mrf.mxu0
        %v329 = vadd.f32 %v306, %v328
        %330 = vdwg.mxu0
        %v331 = vld [vmem:[#allocation7] sm:$0xff]
        %v333 = vsel %vm284, %v331, 0
        %335 = vmatpush.msra.mxu0 0.0
        %336 = vmatpush.msra.mxu0 0.0
        %337 = vmatpush.msra.mxu0 0.0
        %338 = vmatpush.msra.mxu0 0.0
        %339 = vmatpush.msra.mxu0 0.0
        %340 = vmatpush.msra.mxu0 0.0
        %341 = vmatpush.msra.mxu0 0.0
        %342 = vmatpush.msra.mxu0 0.0
        %343 = vmatpush.msra.mxu0 0.0
        %344 = vmatpush.msra.mxu0 0.0
        %345 = vmatpush.msra.mxu0 0.0
        %346 = vmatpush.msra.mxu0 0.0
        %347 = vmatpush.msra.mxu0 0.0
        %348 = vmatpush.msra.mxu0 0.0
        %349 = vmatpush.msra.mxu0 0.0
        %350 = vmatpush.msra.mxu0 %v281
        %351 = vmatmul.f32.gmra.mxu0 %v333
        %v352 = vpop.f32.mrf.mxu0
        %v353 = vadd.f32 0.0, %v352
        %354 = vdwg.mxu0
        %v355 = vadd.f32 %v329, %v353
        %v356 = vld [vmem:[%s4] sm:$0xff]
        %358 = vset.pattern.permute.xlu0 0
        %359 = vperm.xlu0 %358, %v356
        %v360 = vpop.permute.xlu0 %359
        %v362 = vadd.f32 %v355, %v360
        %v363 = vmax.f32 %v362, 0.0
        %v364 = vadd.f32 %v271, %v363
        %365 = vst [vmem:[%s270] sm:$0xff] %v364
        %s366 = sand.u32 %s141, 1
        %s367 = scalar_lea.sflag [#allocation4], %s366
        %s368 = sand.u32 %s141, 1
        %s369 = smul.addr %s368, 8
        %s370 = scalar_lea.vmem [#allocation8], %s369
        // Predicated region
        $region53: #{tpu_custom_call.1} parent=39 // pred_check
          %p371 = pneg %p151
        $region54: #{tpu_custom_call.1} parent=39 // pred_check_branch
          %373 = sbr.rel (%p371) target = $region56
        $region55: #{tpu_custom_call.1} parent=39 // pred_region
          %375 = vsyncadd %s367, 0
          %s376 = smul.addr %s23, 8
          %s377 = scalar_lea.hbm %s5, %s376
          %s379 = sshll.u32 %s370, 4
          %s380 = int_to_ptr.vmem [resolvable:$true] %s379
          %s381 = sshll.u32 %s377, 4
          %s382 = int_to_ptr.hbm [resolvable:$true] %s381
          %384 = dma.vmem_to_hbm [thread:$0]  %s380, 128, %s382, %s367
        $region56: #{tpu_custom_call.1} parent=39 // pred_fallthru
          _
      $region40: #{tpu_custom_call.1} parent=5 // pred_fallthru
        _
      %p385 = scmp.le.s32.totalorder 2, %s18
      // Predicated region
      $region57: #{tpu_custom_call.1} parent=5 // pred_check
        %p386 = pneg %p385
      $region58: #{tpu_custom_call.1} parent=5 // pred_check_branch
        %388 = sbr.rel (%p386) target = $region60
      $region59: #{tpu_custom_call.1} parent=5 // pred_region
        %s389 = ssub.s32 %s18, 2
        // Predicated region
        $region61: #{tpu_custom_call.1} parent=59 // pred_check
          %p390 = pneg %p157
        $region62: #{tpu_custom_call.1} parent=59 // pred_check_branch
          %392 = sbr.rel (%p390) target = $region64
        $region63: #{tpu_custom_call.1} parent=59 // pred_region
          %s393 = sand.u32 %s142, 1
          %s394 = scalar_lea.sflag [#allocation4], %s393
          %s395 = sand.u32 %s142, 1
          %s396 = smul.addr %s395, 8
          %s397 = scalar_lea.vmem [#allocation8], %s396
          %399 = dma.done %s394, 128
        $region64: #{tpu_custom_call.1} parent=59 // pred_fallthru
          _
      $region60: #{tpu_custom_call.1} parent=5 // pred_fallthru
        _
    $region6: #{tpu_custom_call.1} parent=1 // loop_footer
      %s22 = sadd.s32 1, %s18
    $region7: #{tpu_custom_call.1} parent=1 // loop_footer_branch
      %17 = sbr.rel target = $region3
    $region8: #{tpu_custom_call.1} parent=1 // loop_exit
      _
    %400 = vsyncpa [#allocation3], 1
    %s401 = scalar_lea.sflag [#allocation3], 1
    %402 = vsyncpa %s401, 1
    %403 = vsyncpa [#allocation6], 1
    %404 = vsyncpa [#allocation4], 1
    %s405 = scalar_lea.sflag [#allocation4], 1
    %406 = vsyncpa %s405, 1

</llo_original>
